<compile_context>
chip_gen: v7x
topology: tpu7x:2x2x1
jax: 0.10.0
libtpu: 0.0.40
codegen_flags: <defaults>
</compile_context>

<pallas_src>
import functools

import jax
import jax.numpy as jnp
from jax.experimental import pallas as pl
from jax.experimental.pallas import tpu as pltpu


# --------------------------------------------------------------------------- #
# Helpers
# --------------------------------------------------------------------------- #
def _round_up(v, n):
    return ((v + n - 1) // n) * n


def _physical_vmem_bytes():
    """Per-TensorCore VMEM capacity; conservative 64 MiB (v7x) fallback."""
    try:
        return int(pltpu.get_tpu_info().vmem_capacity_bytes)
    except Exception:
        return 64 * 1024 * 1024


def _pick_tn(hidden, w_itemsize, budget_bytes):
    """Largest output-column tile (multiple of 128 dividing `hidden`) whose
    single (hidden, tn) weight block stays under `budget_bytes`.  Floors at
    256 when possible (v6e/v7x MXU is 256 wide); 128 otherwise."""
    if hidden % 128 != 0:
        # BlockSpec requires the last block dim to be a multiple of 128 or the
        # full array extent -> full-width block for odd hidden sizes.
        return hidden
    cands = [d for d in range(128, hidden + 1, 128) if hidden % d == 0]
    floor = 256 if any(d >= 256 for d in cands) else 128
    cands = [d for d in cands if d >= floor]
    fitting = [d for d in cands if hidden * d * w_itemsize <= budget_bytes]
    return max(fitting) if fitting else min(cands)


# --------------------------------------------------------------------------- #
# Kernels
# --------------------------------------------------------------------------- #
def _linear_silu_f32(x, wt_ref, b_ref, *, precision, mxu_dtype):
    """SiLU(x @ W^T + b) in f32.  x: (tm, H) value, wt_ref: (H, tn) block."""
    if mxu_dtype is not None and x.dtype != mxu_dtype:
        x = x.astype(mxu_dtype)                    # feed the MXU natively (bf16)
    h = jnp.dot(x, wt_ref[...],
                preferred_element_type=jnp.float32,
                precision=precision)               # (tm, tn), f32 accumulate
    h = h + b_ref[...].astype(jnp.float32)         # bias broadcast (1, tn)
    return h * jax.nn.sigmoid(h)                   # SiLU in f32 (EUP sigmoid)


def _resblock_kernel_full(x_ref, wt_ref, b_ref, o_ref, *, precision, mxu_dtype):
    # tn == hidden: the matmul tile IS the residual tile -> single x stream.
    x = x_ref[...]
    y = _linear_silu_f32(x, wt_ref, b_ref, precision=precision,
                         mxu_dtype=mxu_dtype)
    o_ref[...] = (x.astype(jnp.float32) + y).astype(o_ref.dtype)


def _resblock_kernel_tiled(x_ref, xres_ref, wt_ref, b_ref, o_ref, *,
                           precision, mxu_dtype):
    # tn < hidden: residual columns arrive as a separate (tm, tn) tile; the
    # matmul x stream may already be pre-cast to the MXU dtype.
    y = _linear_silu_f32(x_ref[...], wt_ref, b_ref, precision=precision,
                         mxu_dtype=mxu_dtype)
    o_ref[...] = (xres_ref[...].astype(jnp.float32) + y).astype(o_ref.dtype)


# --------------------------------------------------------------------------- #
# Parameter prep + forward
# --------------------------------------------------------------------------- #
def prepare_resblock_params(weight, bias, *, mxu_dtype=jnp.bfloat16):
    """One-time prep: transpose nn.Linear's (out, in) weight to W^T (in, out)
    and cast to the MXU input dtype (default bf16 — the native MXU format on
    v5e/v6e/v7x).  Pass mxu_dtype=None for the exact-f32 path."""
    wt = weight.T
    if mxu_dtype is not None:
        wt = wt.astype(mxu_dtype)
    return wt, bias


def resblock_forward(x, wt, bias, *, tm=None, tn=None, mxu_dtype=jnp.bfloat16,
                     precision=None):
    """ResBlock forward: x + SiLU(x @ W^T + b).

    x: (..., H).  wt: (H, H) pre-transposed weight (nn.Linear.weight.T),
    ideally already cast to `mxu_dtype`.  bias: (H,).
    """
    orig_shape = x.shape
    hidden = orig_shape[-1]
    assert wt.shape == (hidden, hidden) and bias.shape == (hidden,)

    if mxu_dtype is not None and wt.dtype != mxu_dtype:
        wt = wt.astype(mxu_dtype)
    if precision is None and mxu_dtype is None and x.dtype == jnp.float32:
        # Opt-in exact f32 path (multi-pass MXU emulation, 3-6x slower than
        # the default native bf16 path).
        precision = jax.lax.Precision.HIGHEST

    x2 = x.reshape(-1, hidden)                       # (M, H)
    m = x2.shape[0]

    phys = _physical_vmem_bytes()

    # Output-column tile (lane dense, multiple of 128). Budget = phys/4 for a
    # single weight block (it is double-buffered by the pipeline).
    if tn is None:
        tn = _pick_tn(hidden, jnp.dtype(wt.dtype).itemsize,
                      budget_bytes=phys // 4)
    assert tn == hidden or (tn % 128 == 0 and hidden % tn == 0)

    # Row tile: 512 on 128-MiB-VMEM parts (v5e/v6e), 256 on v7x (64 MiB).
    if tm is None:
        tm = 512 if phys >= (100 << 20) else 256
    tm = min(tm, _round_up(m, 16))

    xb = jnp.dtype(x2.dtype).itemsize
    wb = jnp.dtype(wt.dtype).itemsize
    bb = jnp.dtype(bias.dtype).itemsize
    ob = xb
    xmb = jnp.dtype(mxu_dtype).itemsize if mxu_dtype is not None else xb

    def _est(tm_, tn_):
        tiled = tn_ != hidden
        mm_b = xmb if (tiled and mxu_dtype is not None) else xb
        e = (2 * tm_ * hidden * mm_b      # x matmul row tile (double-buffered)
             + 2 * hidden * tn_ * wb      # W^T column block
             + 2 * 8 * tn_ * bb           # bias (sublane-padded)
             + 2 * tm_ * tn_ * ob)        # output tile
        if tiled:
            e += 2 * tm_ * tn_ * xb       # residual column tile
        return e

    # Fit-check against physical VMEM (matters on v7x's 64 MiB): shrink tiles
    # rather than over-requesting.
    cap = int(phys * 0.85)
    while (_est(tm, tn) > cap and tn > 128 and (tn // 2) % 128 == 0
           and hidden % (tn // 2) == 0):
        tn //= 2
    while _est(tm, tn) > cap and tm > 64:
        tm //= 2

    m_pad = _round_up(m, tm)
    if m_pad != m:
        x2 = jnp.pad(x2, ((0, m_pad - m), (0, 0)))

    grid = (hidden // tn, m_pad // tm)   # j (N blocks) outer, i (M) innermost
    b2 = bias.reshape(1, hidden)

    vmem_limit = min(max(int(_est(tm, tn) * 1.4) + (2 << 20), 32 << 20), cap)
    compiler_params = pltpu.CompilerParams(
        dimension_semantics=("parallel", "parallel"),
        vmem_limit_bytes=vmem_limit,
    )

    if tn == hidden:
        # Single x stream: matmul tile doubles as the residual tile.
        kernel = functools.partial(_resblock_kernel_full, precision=precision,
                                   mxu_dtype=mxu_dtype)
        in_specs = [
            pl.BlockSpec((tm, hidden), lambda j, i: (i, 0)),   # x
            pl.BlockSpec((hidden, tn), lambda j, i: (0, j)),   # W^T (full width)
            pl.BlockSpec((1, tn), lambda j, i: (0, j)),        # bias
        ]
        operands = (x2, wt, b2)
    else:
        # Column-tiled weight: pre-cast the (H/tn)-amplified matmul x stream
        # to the MXU dtype; keep the residual stream in the original dtype.
        if mxu_dtype is not None and x2.dtype != mxu_dtype:
            x_mm = x2.astype(mxu_dtype)
        else:
            x_mm = x2
        kernel = functools.partial(_resblock_kernel_tiled, precision=precision,
                                   mxu_dtype=mxu_dtype)
        in_specs = [
            pl.BlockSpec((tm, hidden), lambda j, i: (i, 0)),   # x (matmul)
            pl.BlockSpec((tm, tn), lambda j, i: (i, j)),       # x (residual cols)
            pl.BlockSpec((hidden, tn), lambda j, i: (0, j)),   # W^T column block
            pl.BlockSpec((1, tn), lambda j, i: (0, j)),        # bias
        ]
        operands = (x_mm, x2, wt, b2)

    out = pl.pallas_call(
        kernel,
        out_shape=jax.ShapeDtypeStruct((m_pad, hidden), x.dtype),
        grid=grid,
        in_specs=in_specs,
        out_specs=pl.BlockSpec((tm, tn), lambda j, i: (i, j)),
        compiler_params=compiler_params,
    )(*operands)

    if m_pad != m:
        out = out[:m]
    return out.reshape(orig_shape)


# --------------------------------------------------------------------------- #
# Self-test
# --------------------------------------------------------------------------- #
if __name__ == "__main__":
    batch, seq, hidden = 2, 8, 32

    key = jax.random.PRNGKey(0)
    kx, kw, kb, kx2, kw2, kb2 = jax.random.split(key, 6)

    x = jax.random.normal(kx, (batch, seq, hidden), dtype=jnp.float32)
    # Random weight so the MXU path is exercised (the module zero-inits the
    # weight; that case is tested separately below).
    weight = jax.random.normal(kw, (hidden, hidden), dtype=jnp.float32) * 0.02
    bound = 1.0 / (hidden ** 0.5)
    bias = jax.random.uniform(kb, (hidden,), minval=-bound, maxval=bound,
                              dtype=jnp.float32)

    def ref_fn(xv, wv, bv):
        h = jnp.einsum("...h,ho->...o", xv, wv.T,
                       precision=jax.lax.Precision.HIGHEST) + bv
        return xv + h * jax.nn.sigmoid(h)

    ref = ref_fn(x, weight, bias)

    # 1) Default fast path: native bf16 MXU inputs, f32 accumulate.
    wt_bf16, b = prepare_resblock_params(weight, bias)      # W^T in bf16
    out = jax.block_until_ready(resblock_forward(x, wt_bf16, b))
    assert out.shape == x.shape and out.dtype == x.dtype
    assert jnp.allclose(out, ref, atol=5e-2, rtol=5e-2), "mismatch (bf16 MXU)"

    # 2) Opt-in exact-f32 path (Precision.HIGHEST), tight tolerance.
    wt_f32, _ = prepare_resblock_params(weight, bias, mxu_dtype=None)
    out_exact = jax.block_until_ready(
        resblock_forward(x, wt_f32, b, mxu_dtype=None))
    assert jnp.allclose(out_exact, ref, atol=1e-5, rtol=1e-5), \
        "mismatch (f32 exact)"

    # 3) Module's actual init (zero weight): h == bias exactly, even in bf16.
    wt0, b0 = prepare_resblock_params(jnp.zeros_like(weight), bias)
    out0 = jax.block_until_ready(resblock_forward(x, wt0, b0))
    ref0 = x + bias * jax.nn.sigmoid(bias)
    assert jnp.allclose(out0, ref0, atol=1e-5, rtol=1e-5), \
        "mismatch (zero-init W)"

    # 4) Column-tiled weight path (tn < hidden): hidden=256, tn forced to 128.
    hidden2 = 256
    xt = jax.random.normal(kx2, (batch, seq, hidden2), dtype=jnp.float32)
    wt2_raw = jax.random.normal(kw2, (hidden2, hidden2), dtype=jnp.float32) * 0.02
    bd2 = 1.0 / (hidden2 ** 0.5)
    bs2 = jax.random.uniform(kb2, (hidden2,), minval=-bd2, maxval=bd2,
                             dtype=jnp.float32)
    wt2, _ = prepare_resblock_params(wt2_raw, bs2)
    out2 = jax.block_until_ready(resblock_forward(xt, wt2, bs2, tn=128))
    ref2 = ref_fn(xt, wt2_raw, bs2)
    assert jnp.allclose(out2, ref2, atol=5e-2, rtol=5e-2), \
        "mismatch (tiled-N path)"

    print("KERNEL_OK")
</pallas_src>

<mosaic_0001>
module attributes {stable_mosaic.version = 11 : i64} {
  func.func @_resblock_kernel_full(%arg0: i32, %arg1: i32, %arg2: memref<16x32xf32, #tpu.memory_space<vmem>>, %arg3: memref<32x32xbf16, #tpu.memory_space<vmem>>, %arg4: memref<1x32xf32, #tpu.memory_space<vmem>>, %arg5: memref<16x32xf32, #tpu.memory_space<vmem>>) attributes {dimension_semantics = [#tpu.dimension_semantics<parallel>, #tpu.dimension_semantics<parallel>], iteration_bounds = array<i64: 1, 1>, scalar_prefetch = 0 : i64, scratch_operands = 0 : i64, tpu.core_type = #tpu.core_type<tc>, window_params = [{transform_indices = @transform_0, window_bounds = array<i64: 16, 32>}, {transform_indices = @transform_1, window_bounds = array<i64: 32, 32>}, {transform_indices = @transform_2, window_bounds = array<i64: 1, 32>}, {transform_indices = @transform_3, window_bounds = array<i64: 16, 32>}]} {
    %c0 = arith.constant 0 : index
    %c0_0 = arith.constant 0 : index
    %0 = vector.load %arg2[%c0, %c0_0] : memref<16x32xf32, #tpu.memory_space<vmem>>, vector<16x32xf32>
    %1 = arith.truncf %0 : vector<16x32xf32> to vector<16x32xbf16>
    %c0_1 = arith.constant 0 : index
    %c0_2 = arith.constant 0 : index
    %2 = vector.load %arg3[%c0_1, %c0_2] : memref<32x32xbf16, #tpu.memory_space<vmem>>, vector<32x32xbf16>
    %cst = arith.constant dense<0.000000e+00> : vector<16x32xf32>
    %3 = tpu.matmul %1, %2, %cst {dimension_numbers = #tpu.dot_dimension_numbers<[1], [0], [0], [1], [0, 0, 1, 1], [], []>} : vector<16x32xbf16>, vector<32x32xbf16>, vector<16x32xf32> -> vector<16x32xf32>
    %c0_3 = arith.constant 0 : index
    %c0_4 = arith.constant 0 : index
    %4 = vector.load %arg4[%c0_3, %c0_4] : memref<1x32xf32, #tpu.memory_space<vmem>>, vector<1x32xf32>
    %5 = vector.broadcast %4 : vector<1x32xf32> to vector<16x32xf32>
    %6 = arith.addf %3, %5 : vector<16x32xf32>
    %7 = arith.negf %6 : vector<16x32xf32>
    %8 = math.exp %7 : vector<16x32xf32>
    %cst_5 = arith.constant 1.000000e+00 : f32
    %9 = vector.broadcast %cst_5 : f32 to vector<16x32xf32>
    %10 = arith.addf %9, %8 : vector<16x32xf32>
    %11 = arith.divf %9, %10 : vector<16x32xf32>
    %12 = arith.mulf %6, %11 : vector<16x32xf32>
    %13 = arith.addf %0, %12 : vector<16x32xf32>
    %c0_6 = arith.constant 0 : index
    %c0_7 = arith.constant 0 : index
    %14 = vector.load %arg5[%c0_6, %c0_7] : memref<16x32xf32, #tpu.memory_space<vmem>>, vector<16x32xf32>
    tpu.vector_store %arg5[%c0_6, %c0_7], %13 {strides = array<i32>} : memref<16x32xf32, #tpu.memory_space<vmem>>, vector<16x32xf32>,
    return
  }
  func.func @transform_0(%arg0: i32, %arg1: i32) -> (i32, i32) {
    %c0_i32 = arith.constant 0 : i32
    %c0_i32_0 = arith.constant 0 : i32
    return %arg1, %c0_i32 : i32, i32
  }
  func.func @transform_1(%arg0: i32, %arg1: i32) -> (i32, i32) {
    %c0_i32 = arith.constant 0 : i32
    %c0_i32_0 = arith.constant 0 : i32
    return %c0_i32, %arg0 : i32, i32
  }
  func.func @transform_2(%arg0: i32, %arg1: i32) -> (i32, i32) {
    %c0_i32 = arith.constant 0 : i32
    %c0_i32_0 = arith.constant 0 : i32
    return %c0_i32, %arg0 : i32, i32
  }
  func.func @transform_3(%arg0: i32, %arg1: i32) -> (i32, i32) {
    %c0_i32 = arith.constant 0 : i32
    return %arg1, %arg0 : i32, i32
  }
}

</mosaic_0001>

<llo_original>
// kernel: tpu_custom_call.1
$region0: #{tpu_custom_call.1}
  #allocation0 [shape = 'u32[]', space=smem, size = 0x4, offset = 0x4, fixed_abs, tag = 'smem constant byte address 0x4 - core index']
  #allocation1 [shape = 'u32[144,128]{1,0:T(1,128)}', space=vmem, size = 0x12000, scoped, tag = 'internal scratch']
  %s0 = inlined_call_operand.hbm [shape: f32[16,32], index: 0, kind: input, shape index: {}]
  %s1 = inlined_call_operand.hbm [shape: bf16[32,32], index: 1, kind: input, shape index: {}]
  %s2 = inlined_call_operand.vmem [shape: f32[1,32], index: 2, kind: input, shape index: {}]
  %s3 = inlined_call_operand.hbm [shape: f32[16,32], index: 3, kind: output, shape index: {}]
  %s4 = sld [smem:[#allocation0]]
  $region30: #{tpu_custom_call.1} parent=0
    _
  %s6 = ssub.s32 1, %s4
  %s7 = scalar_select 0, %s6, %s4
  $region1: #{tpu_custom_call.1} parent=0
    #allocation2 [shape = 'u8[8192]{0}', space=vmem, size = 0x2000, scoped, tag = 'input window, operand 0, single buffered']
    #allocation3 [shape = 's32[1]{0}', space=sflag, size = 0x4, scoped, tag = 'scoped memory for tpu_custom_call.1']
    #allocation4 [shape = 's32[1]{0}', space=sflag, size = 0x4, scoped, tag = 'scoped memory for tpu_custom_call.1']
    #allocation5 [shape = 'u8[8192]{0}', space=vmem, size = 0x2000, scoped, tag = 'input window, operand 1, single buffered']
    #allocation6 [shape = 's32[1]{0}', space=sflag, size = 0x4, scoped, tag = 'scoped memory for tpu_custom_call.1']
    #allocation7 [shape = 'u8[8192]{0}', space=vmem, size = 0x2000, scoped, tag = 'output window, operand 0, single buffered']
    %8 = vsyncpa [#allocation3], 0
    %9 = vsyncpa [#allocation6], 0
    %10 = vsyncpa [#allocation4], 0
    // Predicated region
    $region2: #{tpu_custom_call.1} parent=1 // pred_check
      _
    $region3: #{tpu_custom_call.1} parent=1 // pred_check_branch
      %12 = sbr.rel (0) target = $region5
    $region4: #{tpu_custom_call.1} parent=1 // pred_region
      %s14 = ssub.s32 256, 256
      %15 = vsyncadd [#allocation3], %s14
      %s16 = sshll.u32 [#allocation2], 4
      %s17 = int_to_ptr.vmem [resolvable:$true] %s16
      %22 = dma.hbm_to_vmem [thread:$0]  %s0, 256, %s17, [#allocation3], 128, 128, 8
    $region5: #{tpu_custom_call.1} parent=1 // pred_fallthru
      _
    // Predicated region
    $region6: #{tpu_custom_call.1} parent=1 // pred_check
      _
    $region7: #{tpu_custom_call.1} parent=1 // pred_check_branch
      %24 = sbr.rel (0) target = $region9
    $region8: #{tpu_custom_call.1} parent=1 // pred_region
      %s26 = ssub.s32 256, 256
      %27 = vsyncadd [#allocation6], %s26
      %s28 = sshll.u32 [#allocation5], 4
      %s29 = int_to_ptr.vmem [resolvable:$true] %s28
      %34 = dma.hbm_to_vmem [thread:$0]  %s1, 256, %s29, [#allocation6], 64, 64, 4
    $region9: #{tpu_custom_call.1} parent=1 // pred_fallthru
      _
    // Predicated region
    $region10: #{tpu_custom_call.1} parent=1 // pred_check
      _
    $region11: #{tpu_custom_call.1} parent=1 // pred_check_branch
      %36 = sbr.rel (0) target = $region13
    $region12: #{tpu_custom_call.1} parent=1 // pred_region
      _
    $region13: #{tpu_custom_call.1} parent=1 // pred_fallthru
      _
    // Predicated region
    $region14: #{tpu_custom_call.1} parent=1 // pred_check
      _
    $region15: #{tpu_custom_call.1} parent=1 // pred_check_branch
      %38 = sbr.rel (0) target = $region17
    $region16: #{tpu_custom_call.1} parent=1 // pred_region
      %39 = dma.done [#allocation3], 256
    $region17: #{tpu_custom_call.1} parent=1 // pred_fallthru
      _
    // Predicated region
    $region18: #{tpu_custom_call.1} parent=1 // pred_check
      _
    $region19: #{tpu_custom_call.1} parent=1 // pred_check_branch
      %41 = sbr.rel (0) target = $region21
    $region20: #{tpu_custom_call.1} parent=1 // pred_region
      %42 = dma.done [#allocation6], 256
    $region21: #{tpu_custom_call.1} parent=1 // pred_fallthru
      _
    %v44 = vld [vmem:[#allocation2] sm:$0xff]
    %v45 = vld [vmem:[#allocation2 + $0x8] sm:$0xff]
    %v46 = vpack.c.bf16 %v45, %v44
    %v47 = vld [vmem:[#allocation5] sm:$0xf]
    %v48 = vld [vmem:[#allocation5 + $0x4] sm:$0xf]
    %v49 = vld [vmem:[#allocation5 + $0x8] sm:$0xf]
    %v50 = vld [vmem:[#allocation5 + $0xc] sm:$0xf]
    %v51 = vld [vmem:[%s2] sm:$0x1]
    %v53 = vlaneseq
    %v54 = vshrl.u32 %v53, 7
    %v55 = vsub.s32 0, %v54
    %v56 = vrot.slane %v51, %v55
    %v62 = vunpack.c.l.b16 %v47
    %v63 = vunpack.c.l.b16 %v48
    %v64 = vunpack.c.l.b16 %v49
    %v65 = vunpack.c.l.b16 %v50
    %v66 = vpack.c.b16 %v63, %v62
    %v67 = vpack.c.b16 %v65, %v64
    %vm70 = vcmask 261120
    %v72 = vsel %vm70, %v46, 0
    %74 = vmatprep.subr.bf16.mxu0 0
    %75 = vmatpush1.bf16.msra.mxu0 %v66
    %76 = vmatprep.subr.bf16.mxu0 0
    %77 = vmatpush1.bf16.msra.mxu0 %v67
    %78 = vmatprep.subr.bf16.mxu0 0
    %79 = vmatpush1.bf16.msra.mxu0 0
    %80 = vmatprep.subr.bf16.mxu0 0
    %81 = vmatpush1.bf16.msra.mxu0 0
    %82 = vmatprep.subr.bf16.mxu0 0
    %83 = vmatpush1.bf16.msra.mxu0 0
    %84 = vmatprep.subr.bf16.mxu0 0
    %85 = vmatpush1.bf16.msra.mxu0 0
    %86 = vmatprep.subr.bf16.mxu0 0
    %87 = vmatpush1.bf16.msra.mxu0 0
    %88 = vmatprep.subr.bf16.mxu0 0
    %89 = vmatpush1.bf16.msra.mxu0 0
    %90 = vmatprep.subr.bf16.mxu0 0
    %91 = vmatpush1.bf16.msra.mxu0 0
    %92 = vmatprep.subr.bf16.mxu0 0
    %93 = vmatpush1.bf16.msra.mxu0 0
    %94 = vmatprep.subr.bf16.mxu0 0
    %95 = vmatpush1.bf16.msra.mxu0 0
    %96 = vmatprep.subr.bf16.mxu0 0
    %97 = vmatpush1.bf16.msra.mxu0 0
    %98 = vmatprep.subr.bf16.mxu0 0
    %99 = vmatpush1.bf16.msra.mxu0 0
    %100 = vmatprep.subr.bf16.mxu0 0
    %101 = vmatpush1.bf16.msra.mxu0 0
    %102 = vmatprep.subr.bf16.mxu0 0
    %103 = vmatpush1.bf16.msra.mxu0 0
    %104 = vmatprep.subr.bf16.mxu0 0
    %105 = vmatpush1.bf16.msra.mxu0 0
    %106 = vmatprep.mubr.bf16.mxu0 0
    %107 = vmatmul.mubr.bf16.gmra.mrb[0].mxu0 %v72
    %v108 = vpop.f32.mrb[0].mxu0
    %v109 = vadd.f32 %v56, %v108
    %v110 = vpop.f32.mrb[0].mxu0
    %v111 = vpop.f32.mrb[0].mxu0
    %v112 = vadd.f32 %v56, %v111
    %v113 = vpop.f32.mrb[0].mxu0
    %114 = vdwg.mxu0
    %v115 = vxor.u32 %v109, 2147483648
    %v116 = vxor.u32 %v112, 2147483648
    %v117 = vmul.f32 %v115, 1.442695
    %v118 = vpow.pop %v117
    %v119 = vmul.f32 %v116, 1.442695
    %v120 = vpow.pop %v119
    %v121 = vadd.f32 %v118, 1.0
    %v122 = vadd.f32 %v120, 1.0
    %v123 = vrcp.pop %v121
    %v124 = vmul.f32 1.0, %v123
    %v125 = vrcp.pop %v122
    %v126 = vmul.f32 1.0, %v125
    %v127 = vmul.f32 %v109, %v124
    %v128 = vmul.f32 %v112, %v126
    %v129 = vadd.f32 %v44, %v127
    %v130 = vadd.f32 %v45, %v128
    %131 = vst.msk [vmem:[#allocation7] sm:$0xff] %vm70, %v129
    %132 = vst.msk [vmem:[#allocation7 + $0x8] sm:$0xff] %vm70, %v130
    // Predicated region
    $region22: #{tpu_custom_call.1} parent=1 // pred_check
      _
    $region23: #{tpu_custom_call.1} parent=1 // pred_check_branch
      %134 = sbr.rel (0) target = $region25
    $region24: #{tpu_custom_call.1} parent=1 // pred_region
      %s136 = ssub.s32 256, 256
      %137 = vsyncadd [#allocation4], %s136
      %s138 = sshll.u32 [#allocation7], 4
      %s139 = int_to_ptr.vmem [resolvable:$true] %s138
      %144 = dma.vmem_to_hbm [thread:$0]  %s139, 256, %s3, [#allocation4], 128, 128, 8
    $region25: #{tpu_custom_call.1} parent=1 // pred_fallthru
      _
    // Predicated region
    $region26: #{tpu_custom_call.1} parent=1 // pred_check
      _
    $region27: #{tpu_custom_call.1} parent=1 // pred_check_branch
      %146 = sbr.rel (0) target = $region29
    $region28: #{tpu_custom_call.1} parent=1 // pred_region
      %147 = dma.done [#allocation4], 256
    $region29: #{tpu_custom_call.1} parent=1 // pred_fallthru
      _
    %148 = vsyncpa [#allocation3], 1
    %149 = vsyncpa [#allocation6], 1
    %150 = vsyncpa [#allocation4], 1

</llo_original>
